<compile_context>
chip_gen: v7x
topology: tpu7x:2x2x1
jax: 0.10.0
libtpu: 0.0.40
codegen_flags: <defaults>
</compile_context>

<pallas_src>
import functools

import jax
import jax.numpy as jnp
from jax.experimental import pallas as pl
from jax.experimental.pallas import tpu as pltpu

LRELU_SLOPE = 0.2
BN_EPS = 1e-5


def _leaky_relu(x):
    # mul + max instead of compare + select (no mask vreg per activation vreg).
    return jnp.maximum(x, LRELU_SLOPE * x)


def _round_up(x, m):
    return (x + m - 1) // m * m


def _vmem_limit_bytes():
    """Raise the scoped-VMEM limit where we can query physical capacity."""
    try:
        cap = int(pltpu.get_tpu_info().vmem_capacity_bytes)
        return min(48 * 1024 * 1024, cap * 3 // 4)
    except Exception:  # unknown chip / API unavailable -> keep compiler default
        return None


def _compiler_params(sem, vmem_limit):
    kwargs = dict(dimension_semantics=sem)
    if vmem_limit is not None:
        kwargs["vmem_limit_bytes"] = vmem_limit
    return pltpu.CompilerParams(**kwargs)


def _pick_tile(max_tile, hw_p, cin, c1, c2, itemsize):
    # Rough live bytes per pixel per grid step: x block (2 bufs, compute
    # dtype) + f32 h1/h2/h3 intermediates + compute-dtype h1 copy + f32 out
    # (2 bufs).  Keeps big-ndf configs under ~24 MiB even on v7x (64 MiB).
    per_px = 2 * itemsize * cin + 4 * (c1 + 2 * c2) + itemsize * c1 + 8
    budget_tile = max((24 * 1024 * 1024) // max(per_px, 1), 128)
    tile = min(max_tile, hw_p, budget_tile)
    return max(tile // 128 * 128, 128)


# ---------------------------------------------------------------------------
# Pass A: per-channel sum / sum-of-squares of h2 = W2^T @ leaky(W1^T x + b1)
# (BatchNorm batch statistics).  Grid = (N, n_tiles); per-image partial sums
# are written to output blocks indexed by the batch axis ("parallel", so v7x
# megacore shards it); the pixel-tile axis is the "arbitrary" reduction axis.
# ---------------------------------------------------------------------------
def _stats_kernel(x_ref, w1t_ref, b1_ref, w2t_ref, sum_ref, sumsq_ref,
                  *, mask_last, valid_in_last):
    t = pl.program_id(1)

    @pl.when(t == 0)
    def _init():
        sum_ref[...] = jnp.zeros_like(sum_ref)
        sumsq_ref[...] = jnp.zeros_like(sumsq_ref)

    h1 = jnp.dot(w1t_ref[...], x_ref[...], preferred_element_type=jnp.float32)
    h1 = _leaky_relu(h1 + b1_ref[...])
    h2 = jnp.dot(w2t_ref[...], h1.astype(w2t_ref.dtype),
                 preferred_element_type=jnp.float32)

    def _accum(vals):
        sum_ref[...] += jnp.sum(vals, axis=1, keepdims=True)
        sumsq_ref[...] += jnp.sum(vals * vals, axis=1, keepdims=True)

    if mask_last:  # static: masking code only exists when padding exists,
        last_t = pl.num_programs(1) - 1  # and only runs on the last tile.

        @pl.when(t != last_t)
        def _full():
            _accum(h2)

        @pl.when(t == last_t)
        def _partial():
            lane = jax.lax.broadcasted_iota(jnp.int32, h2.shape, 1)
            _accum(jnp.where(lane < valid_in_last, h2, 0.0))
    else:
        _accum(h2)


# ---------------------------------------------------------------------------
# Pass B: full forward.  BN scale is pre-folded into W2 (wrapper), so the
# kernel only adds the shift.  Fully parallel over (image, pixel-tile);
# lane-dense (1, T) output stores.
# ---------------------------------------------------------------------------
def _fwd_kernel(x_ref, w1t_ref, b1_ref, w2ts_ref, shift_ref, w3_ref, out_ref):
    h1 = jnp.dot(w1t_ref[...], x_ref[...], preferred_element_type=jnp.float32)
    h1 = _leaky_relu(h1 + b1_ref[...])
    h2s = jnp.dot(w2ts_ref[...], h1.astype(w2ts_ref.dtype),
                  preferred_element_type=jnp.float32)
    h3 = _leaky_relu(h2s + shift_ref[...])
    # Final 1x1 conv to a single channel: broadcast-mul + sublane reduce
    # (VPU/XLU), not an N=1 MXU matmul.
    out = jnp.sum(h3 * w3_ref[...], axis=0, keepdims=True)
    out_ref[...] = out.astype(out_ref.dtype)
    # TODO(synk): use_sigmoid=True variant would apply jax.nn.sigmoid here;
    # PyTorch default is use_sigmoid=False so it is not exercised.


def pixel_discriminator_pallas(x_nchw, params, *, max_tile=8192,
                               compute_dtype=jnp.bfloat16):
    """x_nchw: (N, Cin, H, W) float32. Returns (N, 1, H, W) float32."""
    w1, b1, w2, gamma, beta, w3 = (params[k] for k in
                                   ("w1", "b1", "w2", "gamma", "beta", "w3"))
    n, cin, hh, ww = x_nchw.shape
    c1 = w1.shape[1]
    c2 = w2.shape[1]

    hw = hh * ww
    hw_p = _round_up(hw, 128)
    itemsize = jnp.dtype(compute_dtype).itemsize
    tile = _pick_tile(max_tile, hw_p, cin, c1, c2, itemsize)
    n_tiles = pl.cdiv(hw_p, tile)
    mask_last = (n_tiles * tile != hw)          # padded / ragged last tile
    valid_in_last = hw - (n_tiles - 1) * tile   # static per-image valid count

    # NCHW -> (N, Cin, H*W): a free reshape (no HBM transpose).  Channels end
    # up on sublanes, pixels on lanes inside each block.
    x3 = x_nchw.reshape(n, cin, hw).astype(compute_dtype)
    if hw_p != hw:
        x3 = jnp.pad(x3, ((0, 0), (0, 0), (0, hw_p - hw)))

    # Weights in transposed (Cout, Cin) / column form.  MXU operands go to
    # compute_dtype (bf16 by default); everything else stays f32.
    w1t = jnp.transpose(w1).astype(compute_dtype)        # (c1, cin)
    b1c = b1.reshape(c1, 1).astype(jnp.float32)
    w2t = jnp.transpose(w2).astype(jnp.float32)          # (c2, c1), f32 master
    w2t_c = w2t.astype(compute_dtype)
    w3c = w3.reshape(c2, 1).astype(jnp.float32)
    gammac = gamma.reshape(c2, 1).astype(jnp.float32)
    betac = beta.reshape(c2, 1).astype(jnp.float32)

    vmem_limit = _vmem_limit_bytes()
    full = lambda shape: pl.BlockSpec(shape, lambda ni, t: (0, 0))

    # --- Pass A: batch-norm statistics (per-image partial sums) -------------
    ssum, ssq = pl.pallas_call(
        functools.partial(_stats_kernel, mask_last=mask_last,
                          valid_in_last=valid_in_last),
        out_shape=(jax.ShapeDtypeStruct((n, c2, 1), jnp.float32),
                   jax.ShapeDtypeStruct((n, c2, 1), jnp.float32)),
        grid_spec=pltpu.PrefetchScalarGridSpec(
            num_scalar_prefetch=0,
            grid=(n, n_tiles),
            in_specs=[
                pl.BlockSpec((None, cin, tile), lambda ni, t: (ni, 0, t)),
                full((c1, cin)),                              # W1^T
                full((c1, 1)),                                # b1
                full((c2, c1)),                               # W2^T
            ],
            out_specs=(pl.BlockSpec((None, c2, 1), lambda ni, t: (ni, 0, 0)),
                       pl.BlockSpec((None, c2, 1), lambda ni, t: (ni, 0, 0))),
        ),
        compiler_params=_compiler_params(("parallel", "arbitrary"), vmem_limit),
    )(x3, w1t, b1c, w2t_c)

    # Reduce per-image partials and fold BatchNorm (training mode, biased
    # variance) into scale/shift, all in f32.
    # NOTE: var = E[h2^2] - mean^2 can cancel if |mean| >> std; fine for
    # zero-ish-mean discriminator features.
    total = float(n * hw)
    ssum_t = jnp.sum(ssum, axis=0)                # (c2, 1)
    ssq_t = jnp.sum(ssq, axis=0)
    mean = ssum_t / total
    var = jnp.maximum(ssq_t / total - mean * mean, 0.0)
    inv_std = jax.lax.rsqrt(var + BN_EPS)
    scale = gammac * inv_std
    shift = betac - mean * scale
    w2t_scaled = (w2t * scale).astype(compute_dtype)   # fold BN scale into W2

    # --- Pass B: forward pass, fully parallel over (image, pixel tile) ------
    out_flat = pl.pallas_call(
        _fwd_kernel,
        out_shape=jax.ShapeDtypeStruct((n, 1, hw_p), jnp.float32),
        grid_spec=pltpu.PrefetchScalarGridSpec(
            num_scalar_prefetch=0,
            grid=(n, n_tiles),
            in_specs=[
                pl.BlockSpec((None, cin, tile), lambda ni, t: (ni, 0, t)),
                full((c1, cin)),                              # W1^T
                full((c1, 1)),                                # b1
                full((c2, c1)),                               # scale*W2^T
                full((c2, 1)),                                # BN shift
                full((c2, 1)),                                # W3 column
            ],
            out_specs=pl.BlockSpec((None, 1, tile), lambda ni, t: (ni, 0, t)),
        ),
        compiler_params=_compiler_params(("parallel", "parallel"), vmem_limit),
    )(x3, w1t, b1c, w2t_scaled, shift, w3c)

    if hw_p != hw:
        out_flat = out_flat[:, :, :hw]
    return out_flat.reshape(n, 1, hh, ww)


def pixel_discriminator_ref(x_nchw, params):
    """Pure-JAX f32 reference of the PyTorch forward (training-mode BN)."""
    w1, b1, w2, gamma, beta, w3 = (params[k] for k in
                                   ("w1", "b1", "w2", "gamma", "beta", "w3"))
    n, cin, hh, ww = x_nchw.shape
    x = jnp.transpose(x_nchw, (0, 2, 3, 1)).reshape(-1, cin)
    h1 = _leaky_relu(x @ w1 + b1)
    h2 = h1 @ w2
    mean = jnp.mean(h2, axis=0, keepdims=True)
    var = jnp.mean((h2 - mean) ** 2, axis=0, keepdims=True)  # biased (PyTorch)
    h3 = _leaky_relu((h2 - mean) * jax.lax.rsqrt(var + BN_EPS) * gamma + beta)
    out = h3 @ w3
    return jnp.transpose(out.reshape(n, hh, ww, 1), (0, 3, 1, 2))


def make_params(key, input_nc, ndf):
    """Deterministic synthetic weights (shapes match the PyTorch module)."""
    k1, k2, k3, k4 = jax.random.split(key, 4)
    c1, c2 = ndf, 2 * ndf
    return dict(
        # 1x1 conv weights stored as (Cin, Cout) matmul matrices.
        w1=0.1 * jax.random.normal(k1, (input_nc, c1), jnp.float32),
        b1=0.1 * jax.random.normal(k2, (1, c1), jnp.float32),
        w2=0.1 * jax.random.normal(k3, (c1, c2), jnp.float32),
        gamma=jnp.ones((1, c2), jnp.float32),   # BatchNorm2d affine defaults
        beta=jnp.zeros((1, c2), jnp.float32),
        w3=0.1 * jax.random.normal(k4, (c2, 1), jnp.float32),
    )


if __name__ == "__main__":
    key = jax.random.PRNGKey(0)
    kx, kp, kx2 = jax.random.split(key, 3)

    # Small shapes consistent with the module: N=2, Cin=4, H=W=16, ndf=8.
    N, CIN, H, W = 2, 4, 16, 16
    NDF = 8
    x = jax.random.normal(kx, (N, CIN, H, W), jnp.float32)
    params = make_params(kp, CIN, NDF)

    # Main (bf16-MXU) path; compare to the f32 reference with a bf16-
    # appropriate tolerance.
    out = jax.block_until_ready(pixel_discriminator_pallas(x, params))
    ref = pixel_discriminator_ref(x, params)
    assert out.shape == (N, 1, H, W)
    assert jnp.allclose(out, ref, atol=3e-2, rtol=3e-2), "bf16 path mismatch"

    # f32 path on a non-128-multiple spatial size: exercises the per-image
    # pixel padding + last-tile masking; tight tolerance vs the reference.
    x2 = jax.random.normal(kx2, (3, CIN, 10, 12), jnp.float32)
    out2 = jax.block_until_ready(
        pixel_discriminator_pallas(x2, params, compute_dtype=jnp.float32))
    ref2 = pixel_discriminator_ref(x2, params)
    assert out2.shape == (3, 1, 10, 12)
    assert jnp.allclose(out2, ref2, atol=1e-4, rtol=1e-4), "f32 path mismatch"

    print("KERNEL_OK")
</pallas_src>

<mosaic_0001>
module attributes {stable_mosaic.version = 11 : i64} {
  func.func @_stats_kernel(%arg0: i32, %arg1: i32, %arg2: memref<1x4x256xbf16, #tpu.memory_space<vmem>>, %arg3: memref<8x4xbf16, #tpu.memory_space<vmem>>, %arg4: memref<8x1xf32, #tpu.memory_space<vmem>>, %arg5: memref<16x8xbf16, #tpu.memory_space<vmem>>, %arg6: memref<1x16x1xf32, #tpu.memory_space<vmem>>, %arg7: memref<1x16x1xf32, #tpu.memory_space<vmem>>) attributes {dimension_semantics = [#tpu.dimension_semantics<parallel>, #tpu.dimension_semantics<arbitrary>], iteration_bounds = array<i64: 2, 1>, scalar_prefetch = 0 : i64, scratch_operands = 0 : i64, tpu.core_type = #tpu.core_type<tc>, window_params = [{transform_indices = @transform_0, window_bounds = array<i64: 1, 4, 256>}, {pipeline_mode = #tpu.pipeline_mode<synchronous>, transform_indices = @transform_1, window_bounds = array<i64: 8, 4>}, {pipeline_mode = #tpu.pipeline_mode<synchronous>, transform_indices = @transform_2, window_bounds = array<i64: 8, 1>}, {pipeline_mode = #tpu.pipeline_mode<synchronous>, transform_indices = @transform_3, window_bounds = array<i64: 16, 8>}, {transform_indices = @transform_4, window_bounds = array<i64: 1, 16, 1>}, {transform_indices = @transform_5, window_bounds = array<i64: 1, 16, 1>}]} {
    %c0_i32 = arith.constant 0 : i32
    %0 = arith.cmpi eq, %arg1, %c0_i32 : i32
    %1 = arith.extui %0 : i1 to i32
    %c0_i32_0 = arith.constant 0 : i32
    %2 = arith.cmpi ne, %1, %c0_i32_0 : i32
    scf.if %2 {
      %cst_25 = arith.constant 0.000000e+00 : f32
      %33 = vector.broadcast %cst_25 : f32 to vector<16x1xf32>
      %c0_26 = arith.constant 0 : index
      %c0_27 = arith.constant 0 : index
      %c0_28 = arith.constant 0 : index
      %34 = vector.load %arg6[%c0_26, %c0_27, %c0_28] : memref<1x16x1xf32, #tpu.memory_space<vmem>>, vector<1x16x1xf32>
      %35 = vector.shape_cast %34 : vector<1x16x1xf32> to vector<16x1xf32>
      %36 = vector.shape_cast %33 : vector<16x1xf32> to vector<1x16x1xf32>
      tpu.vector_store %arg6[%c0_26, %c0_27, %c0_28], %36 {strides = array<i32>} : memref<1x16x1xf32, #tpu.memory_space<vmem>>, vector<1x16x1xf32>,
      %cst_29 = arith.constant 0.000000e+00 : f32
      %37 = vector.broadcast %cst_29 : f32 to vector<16x1xf32>
      %c0_30 = arith.constant 0 : index
      %c0_31 = arith.constant 0 : index
      %c0_32 = arith.constant 0 : index
      %38 = vector.load %arg7[%c0_30, %c0_31, %c0_32] : memref<1x16x1xf32, #tpu.memory_space<vmem>>, vector<1x16x1xf32>
      %39 = vector.shape_cast %38 : vector<1x16x1xf32> to vector<16x1xf32>
      %40 = vector.shape_cast %37 : vector<16x1xf32> to vector<1x16x1xf32>
      tpu.vector_store %arg7[%c0_30, %c0_31, %c0_32], %40 {strides = array<i32>} : memref<1x16x1xf32, #tpu.memory_space<vmem>>, vector<1x16x1xf32>,
    } else {
    }
    %c0 = arith.constant 0 : index
    %c0_1 = arith.constant 0 : index
    %3 = vector.load %arg3[%c0, %c0_1] : memref<8x4xbf16, #tpu.memory_space<vmem>>, vector<8x4xbf16>
    %c0_2 = arith.constant 0 : index
    %c0_3 = arith.constant 0 : index
    %c0_4 = arith.constant 0 : index
    %4 = vector.load %arg2[%c0_2, %c0_3, %c0_4] : memref<1x4x256xbf16, #tpu.memory_space<vmem>>, vector<1x4x256xbf16>
    %5 = vector.shape_cast %4 : vector<1x4x256xbf16> to vector<4x256xbf16>
    %cst = arith.constant dense<0.000000e+00> : vector<8x256xf32>
    %6 = tpu.matmul %3, %5, %cst {dimension_numbers = #tpu.dot_dimension_numbers<[1], [0], [0], [1], [0, 0, 1, 1], [], []>} : vector<8x4xbf16>, vector<4x256xbf16>, vector<8x256xf32> -> vector<8x256xf32>
    %c0_5 = arith.constant 0 : index
    %c0_6 = arith.constant 0 : index
    %7 = vector.load %arg4[%c0_5, %c0_6] : memref<8x1xf32, #tpu.memory_space<vmem>>, vector<8x1xf32>
    %8 = vector.broadcast %7 : vector<8x1xf32> to vector<8x256xf32>
    %9 = arith.addf %6, %8 : vector<8x256xf32>
    %cst_7 = arith.constant 2.000000e-01 : f32
    %10 = vector.broadcast %cst_7 : f32 to vector<8x256xf32>
    %11 = arith.mulf %10, %9 : vector<8x256xf32>
    %12 = arith.maximumf %9, %11 : vector<8x256xf32>
    %c0_8 = arith.constant 0 : index
    %c0_9 = arith.constant 0 : index
    %13 = vector.load %arg5[%c0_8, %c0_9] : memref<16x8xbf16, #tpu.memory_space<vmem>>, vector<16x8xbf16>
    %14 = arith.truncf %12 : vector<8x256xf32> to vector<8x256xbf16>
    %cst_10 = arith.constant dense<0.000000e+00> : vector<16x256xf32>
    %15 = tpu.matmul %13, %14, %cst_10 {dimension_numbers = #tpu.dot_dimension_numbers<[1], [0], [0], [1], [0, 0, 1, 1], [], []>} : vector<16x8xbf16>, vector<8x256xbf16>, vector<16x256xf32> -> vector<16x256xf32>
    %c0_11 = arith.constant 0 : index
    %c0_12 = arith.constant 0 : index
    %c0_13 = arith.constant 0 : index
    %16 = vector.load %arg6[%c0_11, %c0_12, %c0_13] : memref<1x16x1xf32, #tpu.memory_space<vmem>>, vector<1x16x1xf32>
    %17 = vector.shape_cast %16 : vector<1x16x1xf32> to vector<16x1xf32>
    %cst_14 = arith.constant dense<0.000000e+00> : vector<16xf32>
    %18 = vector.multi_reduction <add>, %15, %cst_14 [1] : vector<16x256xf32> to vector<16xf32>
    %19 = vector.shape_cast %18 : vector<16xf32> to vector<16x1xf32>
    %20 = arith.addf %17, %19 : vector<16x1xf32>
    %c0_15 = arith.constant 0 : index
    %c0_16 = arith.constant 0 : index
    %c0_17 = arith.constant 0 : index
    %21 = vector.load %arg6[%c0_15, %c0_16, %c0_17] : memref<1x16x1xf32, #tpu.memory_space<vmem>>, vector<1x16x1xf32>
    %22 = vector.shape_cast %21 : vector<1x16x1xf32> to vector<16x1xf32>
    %23 = vector.shape_cast %20 : vector<16x1xf32> to vector<1x16x1xf32>
    tpu.vector_store %arg6[%c0_15, %c0_16, %c0_17], %23 {strides = array<i32>} : memref<1x16x1xf32, #tpu.memory_space<vmem>>, vector<1x16x1xf32>,
    %c0_18 = arith.constant 0 : index
    %c0_19 = arith.constant 0 : index
    %c0_20 = arith.constant 0 : index
    %24 = vector.load %arg7[%c0_18, %c0_19, %c0_20] : memref<1x16x1xf32, #tpu.memory_space<vmem>>, vector<1x16x1xf32>
    %25 = vector.shape_cast %24 : vector<1x16x1xf32> to vector<16x1xf32>
    %26 = arith.mulf %15, %15 : vector<16x256xf32>
    %cst_21 = arith.constant dense<0.000000e+00> : vector<16xf32>
    %27 = vector.multi_reduction <add>, %26, %cst_21 [1] : vector<16x256xf32> to vector<16xf32>
    %28 = vector.shape_cast %27 : vector<16xf32> to vector<16x1xf32>
    %29 = arith.addf %25, %28 : vector<16x1xf32>
    %c0_22 = arith.constant 0 : index
    %c0_23 = arith.constant 0 : index
    %c0_24 = arith.constant 0 : index
    %30 = vector.load %arg7[%c0_22, %c0_23, %c0_24] : memref<1x16x1xf32, #tpu.memory_space<vmem>>, vector<1x16x1xf32>
    %31 = vector.shape_cast %30 : vector<1x16x1xf32> to vector<16x1xf32>
    %32 = vector.shape_cast %29 : vector<16x1xf32> to vector<1x16x1xf32>
    tpu.vector_store %arg7[%c0_22, %c0_23, %c0_24], %32 {strides = array<i32>} : memref<1x16x1xf32, #tpu.memory_space<vmem>>, vector<1x16x1xf32>,
    return
  }
  func.func @transform_0(%arg0: i32, %arg1: i32) -> (i32, i32, i32) {
    %c0_i32 = arith.constant 0 : i32
    %c0_i32_0 = arith.constant 0 : i32
    return %arg0, %c0_i32, %arg1 : i32, i32, i32
  }
  func.func @transform_1(%arg0: i32, %arg1: i32) -> (i32, i32) {
    %c0_i32 = arith.constant 0 : i32
    %c0_i32_0 = arith.constant 0 : i32
    %c0_i32_1 = arith.constant 0 : i32
    return %c0_i32, %c0_i32_0 : i32, i32
  }
  func.func @transform_2(%arg0: i32, %arg1: i32) -> (i32, i32) {
    %c0_i32 = arith.constant 0 : i32
    %c0_i32_0 = arith.constant 0 : i32
    %c0_i32_1 = arith.constant 0 : i32
    return %c0_i32, %c0_i32_0 : i32, i32
  }
  func.func @transform_3(%arg0: i32, %arg1: i32) -> (i32, i32) {
    %c0_i32 = arith.constant 0 : i32
    %c0_i32_0 = arith.constant 0 : i32
    %c0_i32_1 = arith.constant 0 : i32
    return %c0_i32, %c0_i32_0 : i32, i32
  }
  func.func @transform_4(%arg0: i32, %arg1: i32) -> (i32, i32, i32) {
    %c0_i32 = arith.constant 0 : i32
    %c0_i32_0 = arith.constant 0 : i32
    %c0_i32_1 = arith.constant 0 : i32
    return %arg0, %c0_i32, %c0_i32_0 : i32, i32, i32
  }
  func.func @transform_5(%arg0: i32, %arg1: i32) -> (i32, i32, i32) {
    %c0_i32 = arith.constant 0 : i32
    %c0_i32_0 = arith.constant 0 : i32
    %c0_i32_1 = arith.constant 0 : i32
    return %arg0, %c0_i32, %c0_i32_0 : i32, i32, i32
  }
}

</mosaic_0001>

<llo_original>
// kernel: tpu_custom_call.1
$region0: #{tpu_custom_call.1}
  #allocation0 [shape = 'u32[]', space=smem, size = 0x4, offset = 0x4, fixed_abs, tag = 'smem constant byte address 0x4 - core index']
  #allocation1 [shape = 'u32[144,128]{1,0:T(1,128)}', space=vmem, size = 0x12000, scoped, tag = 'internal scratch']
  %s0 = inlined_call_operand.vmem [shape: bf16[2,4,256], index: 0, kind: input, shape index: {}]
  %s1 = inlined_call_operand.vmem [shape: bf16[8,4], index: 1, kind: input, shape index: {}]
  %s2 = inlined_call_operand.vmem [shape: f32[8,1], index: 2, kind: input, shape index: {}]
  %s3 = inlined_call_operand.vmem [shape: bf16[16,8], index: 3, kind: input, shape index: {}]
  %s4 = inlined_call_operand.vmem [shape: f32[2,16,1], index: 4, kind: output, shape index: {0}]
  %s5 = inlined_call_operand.vmem [shape: f32[2,16,1], index: 5, kind: output, shape index: {1}]
  %6 = xla_tuple %s4, %s5
  %s7 = sld [smem:[#allocation0]]
  $region61: #{tpu_custom_call.1} parent=0
    _
  %s9 = ssub.s32 1, %s7
  %s10 = scalar_select 0, %s9, %s7
  loop: start=0, step=1, limit=4
  $region2: #{tpu_custom_call.1} parent=0 // loop_pre_header
    _
  $region3: #{tpu_custom_call.1} parent=0 // loop_header
    %s12 = sphi 0, %s16
    %p13 = scmp.ge.s32.totalorder %s12, 4
    %s19 = sphi 0, %s31
    %s20 = sphi 0, %s27
    %s21 = sphi 0, %s19
    %s22 = sphi 0, %s20
    %s23 = sphi 0, %s21
    %s24 = sphi 0, %s22
    %s36 = sphi 0, %s38
    %s39 = sphi 0, %s36
    %s40 = sphi 0, %s39
    %s56 = sphi 0, %s40
    %s60 = sphi 0, %s60
    %s62 = sphi 0, %s60
    %s63 = sphi 0, %s62
    %s77 = sphi 0, %s63
    %s81 = sphi 0, %s81
    %s83 = sphi 0, %s81
    %s84 = sphi 0, %s83
    %s98 = sphi 0, %s84
    %s102 = sphi 0, %s102
    %s104 = sphi 0, %s102
    %s105 = sphi 0, %s104
    %s119 = sphi 0, %s105
    %s125 = sphi 0, %s127
    %s128 = sphi 0, %s125
    %s129 = sphi 0, %s128
    %s145 = sphi 0, %s129
    %s151 = sphi 0, %s153
    %s154 = sphi 0, %s151
    %s155 = sphi 0, %s154
    %s171 = sphi 0, %s155
  $region4: #{tpu_custom_call.1} parent=0 // loop_header_branch
    %15 = sbr.rel (%p13) target = $region8
  $region5: #{tpu_custom_call.1} parent=0 // loop_body
    %s17 = ssub.s32 %s12, 1
    %s18 = ssub.s32 %s12, 2
    %s25 = sadd.s32 1, %s20
    %p26 = scmp.ge.s32.totalorder %s25, 1
    %s27 = scalar_select %p26, 0, %s25
    %s28 = sadd.s32 1, %s19
    %s29 = scalar_select %p26, %s28, %s19
    %p30 = scmp.ge.s32.totalorder %s29, 2
    %s31 = scalar_select %p30, 0, %s29
    %s32 = ssub.s32 %s19, %s31
    %s33 = ssub.s32 %s20, %s27
    %s34 = sor.u32 %s32, %s33
    %p35 = scmp.eq.s32.totalorder %s34, 0
    %s37 = sadd.s32 %s36, 1
    %s38 = scalar_select %p35, %s36, %s37
    %p41 = pneg %p35
    %p42 = scmp.eq.s32.totalorder %s12, 1
    %p43 = por %p41, %p42
    %p44 = scmp.ne.s32.totalorder %s36, %s39
    %p45 = scmp.eq.s32.totalorder %s12, 0
    %p46 = por %p44, %p45
    %p47 = scmp.ne.s32.totalorder %s36, %s39
    %p48 = scmp.eq.s32.totalorder %s17, 1
    %p49 = por %p47, %p48
    %p50 = scmp.ne.s32.totalorder %s39, %s40
    %p51 = scmp.eq.s32.totalorder %s17, 0
    %p52 = por %p50, %p51
    %p53 = scmp.ne.s32.totalorder %s39, %s40
    %p54 = scmp.eq.s32.totalorder %s18, 1
    %p55 = por %p53, %p54
    %p57 = scmp.ne.s32.totalorder %s40, %s56
    %p58 = scmp.eq.s32.totalorder %s18, 0
    %p59 = por %p57, %p58
    %s61 = sadd.s32 %s60, 1
    %p64 = scmp.eq.s32.totalorder %s12, 1
    %p65 = scmp.ne.s32.totalorder %s60, %s62
    %p66 = scmp.eq.s32.totalorder %s12, 0
    %p67 = por %p65, %p66
    %p68 = scmp.ne.s32.totalorder %s60, %s62
    %p69 = scmp.eq.s32.totalorder %s17, 1
    %p70 = por %p68, %p69
    %p71 = scmp.ne.s32.totalorder %s62, %s63
    %p72 = scmp.eq.s32.totalorder %s17, 0
    %p73 = por %p71, %p72
    %p74 = scmp.ne.s32.totalorder %s62, %s63
    %p75 = scmp.eq.s32.totalorder %s18, 1
    %p76 = por %p74, %p75
    %p78 = scmp.ne.s32.totalorder %s63, %s77
    %p79 = scmp.eq.s32.totalorder %s18, 0
    %p80 = por %p78, %p79
    %s82 = sadd.s32 %s81, 1
    %p85 = scmp.eq.s32.totalorder %s12, 1
    %p86 = scmp.ne.s32.totalorder %s81, %s83
    %p87 = scmp.eq.s32.totalorder %s12, 0
    %p88 = por %p86, %p87
    %p89 = scmp.ne.s32.totalorder %s81, %s83
    %p90 = scmp.eq.s32.totalorder %s17, 1
    %p91 = por %p89, %p90
    %p92 = scmp.ne.s32.totalorder %s83, %s84
    %p93 = scmp.eq.s32.totalorder %s17, 0
    %p94 = por %p92, %p93
    %p95 = scmp.ne.s32.totalorder %s83, %s84
    %p96 = scmp.eq.s32.totalorder %s18, 1
    %p97 = por %p95, %p96
    %p99 = scmp.ne.s32.totalorder %s84, %s98
    %p100 = scmp.eq.s32.totalorder %s18, 0
    %p101 = por %p99, %p100
    %s103 = sadd.s32 %s102, 1
    %p106 = scmp.eq.s32.totalorder %s12, 1
    %p107 = scmp.ne.s32.totalorder %s102, %s104
    %p108 = scmp.eq.s32.totalorder %s12, 0
    %p109 = por %p107, %p108
    %p110 = scmp.ne.s32.totalorder %s102, %s104
    %p111 = scmp.eq.s32.totalorder %s17, 1
    %p112 = por %p110, %p111
    %p113 = scmp.ne.s32.totalorder %s104, %s105
    %p114 = scmp.eq.s32.totalorder %s17, 0
    %p115 = por %p113, %p114
    %p116 = scmp.ne.s32.totalorder %s104, %s105
    %p117 = scmp.eq.s32.totalorder %s18, 1
    %p118 = por %p116, %p117
    %p120 = scmp.ne.s32.totalorder %s105, %s119
    %p121 = scmp.eq.s32.totalorder %s18, 0
    %p122 = por %p120, %p121
    %s123 = ssub.s32 %s19, %s31
    %p124 = scmp.eq.s32.totalorder %s123, 0
    %s126 = sadd.s32 %s125, 1
    %s127 = scalar_select %p124, %s125, %s126
    %p130 = pneg %p124
    %p131 = scmp.eq.s32.totalorder %s12, 1
    %p132 = por %p130, %p131
    %p133 = scmp.ne.s32.totalorder %s125, %s128
    %p134 = scmp.eq.s32.totalorder %s12, 0
    %p135 = por %p133, %p134
    %p136 = scmp.ne.s32.totalorder %s125, %s128
    %p137 = scmp.eq.s32.totalorder %s17, 1
    %p138 = por %p136, %p137
    %p139 = scmp.ne.s32.totalorder %s128, %s129
    %p140 = scmp.eq.s32.totalorder %s17, 0
    %p141 = por %p139, %p140
    %p142 = scmp.ne.s32.totalorder %s128, %s129
    %p143 = scmp.eq.s32.totalorder %s18, 1
    %p144 = por %p142, %p143
    %p146 = scmp.ne.s32.totalorder %s129, %s145
    %p147 = scmp.eq.s32.totalorder %s18, 0
    %p148 = por %p146, %p147
    %s149 = ssub.s32 %s19, %s31
    %p150 = scmp.eq.s32.totalorder %s149, 0
    %s152 = sadd.s32 %s151, 1
    %s153 = scalar_select %p150, %s151, %s152
    %p156 = pneg %p150
    %p157 = scmp.eq.s32.totalorder %s12, 1
    %p158 = por %p156, %p157
    %p159 = scmp.ne.s32.totalorder %s151, %s154
    %p160 = scmp.eq.s32.totalorder %s12, 0
    %p161 = por %p159, %p160
    %p162 = scmp.ne.s32.totalorder %s151, %s154
    %p163 = scmp.eq.s32.totalorder %s17, 1
    %p164 = por %p162, %p163
    %p165 = scmp.ne.s32.totalorder %s154, %s155
    %p166 = scmp.eq.s32.totalorder %s17, 0
    %p167 = por %p165, %p166
    %p168 = scmp.ne.s32.totalorder %s154, %s155
    %p169 = scmp.eq.s32.totalorder %s18, 1
    %p170 = por %p168, %p169
    %p172 = scmp.ne.s32.totalorder %s155, %s171
    %p173 = scmp.eq.s32.totalorder %s18, 0
    %p174 = por %p172, %p173
    %p175 = scmp.le.s32.totalorder 1, %s12
    %p176 = scmp.lt.s32.totalorder %s12, 3
    %p177 = pnand %p175, %p176
    %p178 = pneg %p177
    // Predicated region
    $region9: #{tpu_custom_call.1} parent=5 // pred_check
      _
    $region10: #{tpu_custom_call.1} parent=5 // pred_check_branch
      %180 = sbr.rel (%p177) target = $region12
    $region11: #{tpu_custom_call.1} parent=5 // pred_region
      %s181 = ssub.s32 %s12, 1
      // Predicated region
      $region13: #{tpu_custom_call.1} parent=11 // pred_check
        %p182 = pneg %p73
      $region14: #{tpu_custom_call.1} parent=11 // pred_check_branch
        %184 = sbr.rel (%p182) target = $region16
      $region15: #{tpu_custom_call.1} parent=11 // pred_region
        _
      $region16: #{tpu_custom_call.1} parent=11 // pred_fallthru
        _
      // Predicated region
      $region17: #{tpu_custom_call.1} parent=11 // pred_check
        %p185 = pneg %p94
      $region18: #{tpu_custom_call.1} parent=11 // pred_check_branch
        %187 = sbr.rel (%p185) target = $region20
      $region19: #{tpu_custom_call.1} parent=11 // pred_region
        _
      $region20: #{tpu_custom_call.1} parent=11 // pred_fallthru
        _
      // Predicated region
      $region21: #{tpu_custom_call.1} parent=11 // pred_check
        %p188 = pneg %p115
      $region22: #{tpu_custom_call.1} parent=11 // pred_check_branch
        %190 = sbr.rel (%p188) target = $region24
      $region23: #{tpu_custom_call.1} parent=11 // pred_region
        _
      $region24: #{tpu_custom_call.1} parent=11 // pred_fallthru
        _
    $region12: #{tpu_custom_call.1} parent=5 // pred_fallthru
      _
    %p191 = scmp.lt.s32.totalorder %s12, 2
    // Predicated region
    $region25: #{tpu_custom_call.1} parent=5 // pred_check
      %p192 = pneg %p191
    $region26: #{tpu_custom_call.1} parent=5 // pred_check_branch
      %194 = sbr.rel (%p192) target = $region28
    $region27: #{tpu_custom_call.1} parent=5 // pred_region
      // Predicated region
      $region29: #{tpu_custom_call.1} parent=27 // pred_check
        %p195 = pneg %p46
      $region30: #{tpu_custom_call.1} parent=27 // pred_check_branch
        %197 = sbr.rel (%p195) target = $region32
      $region31: #{tpu_custom_call.1} parent=27 // pred_region
        %s198 = smul.u32 2, %s20
        %p199 = scmp.lt.s32.totalorder %s19, 1
        %s200 = scalar_select %p199, %s19, 1
        %p201 = scmp.lt.s32.totalorder %s198, 1
        %s202 = scalar_select %p201, %s198, 1
        %s203 = smul.addr %s200, 2
        %s204 = sadd.s32 %s202, %s203
        %s205 = smul.addr %s204, 2
        %s206 = scalar_lea.vmem %s0, %s205
        %s207 = smul.u32 2, %s20
      $region32: #{tpu_custom_call.1} parent=27 // pred_fallthru
        _
    $region28: #{tpu_custom_call.1} parent=5 // pred_fallthru
      _
    %p208 = scmp.le.s32.totalorder 1, %s12
    %p209 = scmp.lt.s32.totalorder %s12, 3
    %p210 = pnand %p208, %p209
    %p211 = pneg %p210
    // Predicated region
    $region33: #{tpu_custom_call.1} parent=5 // pred_check
      _
    $region34: #{tpu_custom_call.1} parent=5 // pred_check_branch
      %213 = sbr.rel (%p210) target = $region36
    $region35: #{tpu_custom_call.1} parent=5 // pred_region
      %s214 = ssub.s32 %s12, 1
      %s215 = smul.u32 2, %s22
      %p216 = scmp.lt.s32.totalorder %s21, 1
      %s217 = scalar_select %p216, %s21, 1
      %p218 = scmp.lt.s32.totalorder %s215, 1
      %s219 = scalar_select %p218, %s215, 1
      %s220 = smul.addr %s217, 2
      %s221 = sadd.s32 %s219, %s220
      %s222 = smul.addr %s221, 2
      %s223 = scalar_lea.vmem %s0, %s222
      %p224 = pneg %p52
      %p225 = pneg %p49
      %p226 = pneg %p73
      %p227 = pneg %p70
      %p228 = pneg %p94
      %p229 = pneg %p91
      %p230 = pneg %p115
      %p231 = pneg %p112
      %p232 = pneg %p141
      %p233 = pneg %p138
      %p234 = scmp.lt.s32.totalorder %s21, 1
      %s235 = scalar_select %p234, %s21, 1
      %s236 = smul.addr %s235, 2
      %s237 = smul.addr %s236, 8
      %s238 = scalar_lea.vmem %s4, %s237
      %p239 = pneg %p167
      %p240 = pneg %p164
      %p241 = scmp.lt.s32.totalorder %s21, 1
      %s242 = scalar_select %p241, %s21, 1
      %s243 = smul.addr %s242, 2
      %s244 = smul.addr %s243, 8
      %s245 = scalar_lea.vmem %s5, %s244
      %s246 = smul.u32 2, %s22
      %p247 = scmp.lt.s32.totalorder %s21, 1
      %s248 = scalar_select %p247, %s21, 1
      %p249 = scmp.lt.s32.totalorder %s246, 1
      %s250 = scalar_select %p249, %s246, 1
      %s251 = smul.addr %s248, 2
      %s252 = sadd.s32 %s250, %s251
      %s253 = smul.addr %s252, 2
      %s254 = scalar_lea.vmem %s0, %s253
      %s255 = smul.u32 2, %s22
      %p256 = scmp.lt.s32.totalorder %s21, 1
      %s257 = scalar_select %p256, %s21, 1
      %s258 = smul.addr %s257, 2
      %s259 = smul.addr %s258, 8
      %s260 = scalar_lea.vmem %s4, %s259
      %p261 = scmp.lt.s32.totalorder %s21, 1
      %s262 = scalar_select %p261, %s21, 1
      %s263 = smul.addr %s262, 2
      %s264 = smul.addr %s263, 8
      %s265 = scalar_lea.vmem %s5, %s264
      %p267 = scmp.eq.s32.totalorder %s22, 0
      // Predicated region
      $region37: #{tpu_custom_call.1} parent=35 // pred_check
        %p268 = pneg %p267
      $region38: #{tpu_custom_call.1} parent=35 // pred_check_branch
        %270 = sbr.rel (%p268) target = $region40
      $region39: #{tpu_custom_call.1} parent=35 // pred_region
        %vm271 = vcmask 7168
        %272 = vst.msk [vmem:[%s260] sm:$0xff] %vm271, 0.0
        %273 = vst.msk [vmem:[%s260 + $0x8] sm:$0xff] %vm271, 0.0
        %274 = vst.msk [vmem:[%s265] sm:$0xff] %vm271, 0.0
        %275 = vst.msk [vmem:[%s265 + $0x8] sm:$0xff] %vm271, 0.0
      $region40: #{tpu_custom_call.1} parent=35 // pred_fallthru
        _
      %v276 = vld [vmem:[%s1] sm:$0xf]
      %v277 = vld [vmem:[%s254] sm:$0xf]
      %v278 = vld [vmem:[%s2] sm:$0xff]
      %280 = vset.pattern.permute.xlu0 0
      %281 = vperm.xlu0 %280, %v278
      %v282 = vpop.permute.xlu0 %281
      %v286 = vunpack.c.l.s4 1983009808
      %v287 = vunpack.c.0.s8 %v286
      %v288 = vlaneseq
      %v289 = vshrl.u32 %v288, 7
      %v290 = vsub.s32 %v287, %v289
      %v291 = vrot.slane %v277, %v290
      %v292 = vcombine.high %v291, %v291
      %vm293 = vcmask 31744
      %v295 = vsel %vm293, %v276, 0
      %vm297 = vcmask 1041408
      %v299 = vsel %vm297, %v291, 0
      %v302 = vsel %vm297, %v292, 0
      %304 = vmatprep.subr.bf16.mxu0 %v302
      %305 = vmatpush1.bf16.msra.mxu0 %v299
      %306 = vmatprep.subr.bf16.mxu0 0
      %307 = vmatpush1.bf16.msra.mxu0 0
      %308 = vmatprep.subr.bf16.mxu0 0
      %309 = vmatpush1.bf16.msra.mxu0 0
      %310 = vmatprep.subr.bf16.mxu0 0
      %311 = vmatpush1.bf16.msra.mxu0 0
      %312 = vmatprep.subr.bf16.mxu0 0
      %313 = vmatpush1.bf16.msra.mxu0 0
      %314 = vmatprep.subr.bf16.mxu0 0
      %315 = vmatpush1.bf16.msra.mxu0 0
      %316 = vmatprep.subr.bf16.mxu0 0
      %317 = vmatpush1.bf16.msra.mxu0 0
      %318 = vmatprep.subr.bf16.mxu0 0
      %319 = vmatpush1.bf16.msra.mxu0 0
      %320 = vmatprep.subr.bf16.mxu0 0
      %321 = vmatpush1.bf16.msra.mxu0 0
      %322 = vmatprep.subr.bf16.mxu0 0
      %323 = vmatpush1.bf16.msra.mxu0 0
      %324 = vmatprep.subr.bf16.mxu0 0
      %325 = vmatpush1.bf16.msra.mxu0 0
      %326 = vmatprep.subr.bf16.mxu0 0
      %327 = vmatpush1.bf16.msra.mxu0 0
      %328 = vmatprep.subr.bf16.mxu0 0
      %329 = vmatpush1.bf16.msra.mxu0 0
      %330 = vmatprep.subr.bf16.mxu0 0
      %331 = vmatpush1.bf16.msra.mxu0 0
      %332 = vmatprep.subr.bf16.mxu0 0
      %333 = vmatpush1.bf16.msra.mxu0 0
      %334 = vmatprep.subr.bf16.mxu0 0
      %335 = vmatpush1.bf16.msra.mxu0 0
      %336 = vmatprep.mubr.bf16.mxu0 0
      %337 = vmatmul.mubr.bf16.gmra.mrb[0].mxu0 %v295
      %v338 = vpop.f32.mrb[0].mxu0
      %v339 = vadd.f32 %v282, %v338
      %v340 = vpop.f32.mrb[0].mxu0
      %v341 = vadd.f32 %v282, %v340
      %v342 = vpop.f32.mrb[0].mxu0
      %v343 = vpop.f32.mrb[0].mxu0
      %344 = vdwg.mxu0
      %v345 = vmul.f32 %v339, 0.2
      %v346 = vmul.f32 %v341, 0.2
      %v347 = vmax.f32 %v339, %v345
      %v348 = vmax.f32 %v341, %v346
      %v349 = vld [vmem:[%s3] sm:$0xf]
      %v350 = vld [vmem:[%s3 + $0x4] sm:$0xf]
      %v351 = vpack.c.bf16 %v347, %v347
      %v352 = vpack.c.bf16 %v348, %v348
      %v355 = vunpack.c.l.b16 %v349
      %v356 = vunpack.c.l.b16 %v350
      %v357 = vpack.c.b16 %v356, %v355
      %vm358 = vcmask 64512
      %v360 = vsel %vm358, %v357, 0
      %vm362 = vcmask 1043456
      %v364 = vsel %vm362, %v351, 0
      %v367 = vsel %vm362, %v352, 0
      %369 = vmatprep.subr.bf16.mxu0 %v367
      %370 = vmatpush1.bf16.msra.mxu0 %v364
      %371 = vmatprep.subr.bf16.mxu0 0
      %372 = vmatpush1.bf16.msra.mxu0 0
      %373 = vmatprep.subr.bf16.mxu0 0
      %374 = vmatpush1.bf16.msra.mxu0 0
      %375 = vmatprep.subr.bf16.mxu0 0
      %376 = vmatpush1.bf16.msra.mxu0 0
      %377 = vmatprep.subr.bf16.mxu0 0
      %378 = vmatpush1.bf16.msra.mxu0 0
      %379 = vmatprep.subr.bf16.mxu0 0
      %380 = vmatpush1.bf16.msra.mxu0 0
      %381 = vmatprep.subr.bf16.mxu0 0
      %382 = vmatpush1.bf16.msra.mxu0 0
      %383 = vmatprep.subr.bf16.mxu0 0
      %384 = vmatpush1.bf16.msra.mxu0 0
      %385 = vmatprep.subr.bf16.mxu0 0
      %386 = vmatpush1.bf16.msra.mxu0 0
      %387 = vmatprep.subr.bf16.mxu0 0
      %388 = vmatpush1.bf16.msra.mxu0 0
      %389 = vmatprep.subr.bf16.mxu0 0
      %390 = vmatpush1.bf16.msra.mxu0 0
      %391 = vmatprep.subr.bf16.mxu0 0
      %392 = vmatpush1.bf16.msra.mxu0 0
      %393 = vmatprep.subr.bf16.mxu0 0
      %394 = vmatpush1.bf16.msra.mxu0 0
      %395 = vmatprep.subr.bf16.mxu0 0
      %396 = vmatpush1.bf16.msra.mxu0 0
      %397 = vmatprep.subr.bf16.mxu0 0
      %398 = vmatpush1.bf16.msra.mxu0 0
      %399 = vmatprep.subr.bf16.mxu0 0
      %400 = vmatpush1.bf16.msra.mxu0 0
      %401 = vmatprep.mubr.bf16.mxu0 0
      %402 = vmatmul.mubr.bf16.gmra.mrb[0].mxu0 %v360
      %v403 = vpop.f32.mrb[0].mxu0
      %v404 = vadd.f32 0.0, %v403
      %v405 = vpop.f32.mrb[0].mxu0
      %v406 = vadd.f32 0.0, %v405
      %v407 = vpop.f32.mrb[0].mxu0
      %v408 = vadd.f32 0.0, %v407
      %v409 = vpop.f32.mrb[0].mxu0
      %v410 = vadd.f32 0.0, %v409
      %411 = vdwg.mxu0
      %v412 = vld [vmem:[%s260] sm:$0xff]
      %v413 = vld [vmem:[%s260 + $0x8] sm:$0xff]
      %v414 = vadd.f32 %v404, %v406
      %415 = vadd.xlane.f32.xlu0 %v414
      %v416 = vpop.xlane.xlu0 %415
      %v417 = vadd.f32 %v408, %v410
      %418 = vadd.xlane.f32.xlu0 %v417
      %v419 = vpop.xlane.xlu0 %418
      %v420 = vadd.f32 %v412, %v416
      %v421 = vadd.f32 %v413, %v419
      %vm422 = vcmask 7168
      %423 = vst.msk [vmem:[%s260] sm:$0xff] %vm422, %v420
      %424 = vst.msk [vmem:[%s260 + $0x8] sm:$0xff] %vm422, %v421
      %v425 = vld [vmem:[%s265] sm:$0xff]
      %v426 = vld [vmem:[%s265 + $0x8] sm:$0xff]
      %v427 = vmul.f32 %v404, %v404
      %v428 = vmul.f32 %v406, %v406
      %v429 = vmul.f32 %v408, %v408
      %v430 = vmul.f32 %v410, %v410
      %v431 = vadd.f32 %v427, %v428
      %432 = vadd.xlane.f32.xlu0 %v431
      %v433 = vpop.xlane.xlu0 %432
      %v434 = vadd.f32 %v429, %v430
      %435 = vadd.xlane.f32.xlu0 %v434
      %v436 = vpop.xlane.xlu0 %435
      %v437 = vadd.f32 %v425, %v433
      %v438 = vadd.f32 %v426, %v436
      %439 = vst.msk [vmem:[%s265] sm:$0xff] %vm422, %v437
      %440 = vst.msk [vmem:[%s265 + $0x8] sm:$0xff] %vm422, %v438
      %p441 = scmp.lt.s32.totalorder %s21, 1
      %s442 = scalar_select %p441, %s21, 1
      %s443 = smul.addr %s442, 2
      %s444 = smul.addr %s443, 8
      %s445 = scalar_lea.vmem %s4, %s444
      %p446 = scmp.lt.s32.totalorder %s21, 1
      %s447 = scalar_select %p446, %s21, 1
      %s448 = smul.addr %s447, 2
      %s449 = smul.addr %s448, 8
      %s450 = scalar_lea.vmem %s5, %s449
      // Predicated region
      $region41: #{tpu_custom_call.1} parent=35 // pred_check
        %p451 = pneg %p138
      $region42: #{tpu_custom_call.1} parent=35 // pred_check_branch
        %453 = sbr.rel (%p451) target = $region44
      $region43: #{tpu_custom_call.1} parent=35 // pred_region
        _
      $region44: #{tpu_custom_call.1} parent=35 // pred_fallthru
        _
      // Predicated region
      $region45: #{tpu_custom_call.1} parent=35 // pred_check
        %p454 = pneg %p164
      $region46: #{tpu_custom_call.1} parent=35 // pred_check_branch
        %456 = sbr.rel (%p454) target = $region48
      $region47: #{tpu_custom_call.1} parent=35 // pred_region
        _
      $region48: #{tpu_custom_call.1} parent=35 // pred_fallthru
        _
    $region36: #{tpu_custom_call.1} parent=5 // pred_fallthru
      _
    %p457 = scmp.le.s32.totalorder 2, %s12
    // Predicated region
    $region49: #{tpu_custom_call.1} parent=5 // pred_check
      %p458 = pneg %p457
    $region50: #{tpu_custom_call.1} parent=5 // pred_check_branch
      %460 = sbr.rel (%p458) target = $region52
    $region51: #{tpu_custom_call.1} parent=5 // pred_region
      %s461 = ssub.s32 %s12, 2
      // Predicated region
      $region53: #{tpu_custom_call.1} parent=51 // pred_check
        %p462 = pneg %p144
      $region54: #{tpu_custom_call.1} parent=51 // pred_check_branch
        %464 = sbr.rel (%p462) target = $region56
      $region55: #{tpu_custom_call.1} parent=51 // pred_region
        %p465 = scmp.lt.s32.totalorder %s23, 1
        %s466 = scalar_select %p465, %s23, 1
        %s467 = smul.addr %s466, 2
        %s468 = smul.addr %s467, 8
        %s469 = scalar_lea.vmem %s4, %s468
      $region56: #{tpu_custom_call.1} parent=51 // pred_fallthru
        _
      // Predicated region
      $region57: #{tpu_custom_call.1} parent=51 // pred_check
        %p470 = pneg %p170
      $region58: #{tpu_custom_call.1} parent=51 // pred_check_branch
        %472 = sbr.rel (%p470) target = $region60
      $region59: #{tpu_custom_call.1} parent=51 // pred_region
        %p473 = scmp.lt.s32.totalorder %s23, 1
        %s474 = scalar_select %p473, %s23, 1
        %s475 = smul.addr %s474, 2
        %s476 = smul.addr %s475, 8
        %s477 = scalar_lea.vmem %s5, %s476
      $region60: #{tpu_custom_call.1} parent=51 // pred_fallthru
        _
    $region52: #{tpu_custom_call.1} parent=5 // pred_fallthru
      _
  $region6: #{tpu_custom_call.1} parent=0 // loop_footer
    %s16 = sadd.s32 1, %s12
  $region7: #{tpu_custom_call.1} parent=0 // loop_footer_branch
    %11 = sbr.rel target = $region3
  $region8: #{tpu_custom_call.1} parent=0 // loop_exit
    _

</llo_original>
